<compile_context>
chip_gen: v6e
topology: v6e:2x2x1
jax: 0.10.0
libtpu: 0.0.40
codegen_flags: <defaults>
</compile_context>

<pallas_src>
import numpy as np
import jax
import jax.numpy as jnp
from jax import lax
from jax.experimental import pallas as pl
from jax.experimental.pallas import tpu as pltpu


# ------------------------------ small helpers --------------------------------

def _leaky(x):
    # nn.LeakyReLU default negative_slope = 0.01
    return jnp.where(x > 0, x, 0.01 * x)


def _round_up(n, m):
    return -(-n // m) * m


def _pack_conv_weight(w):
    # torch layout (C_out, C_in, K) -> (C_out, K*C_in) with [:, k*C_in + i] == w[:, i, k]
    c_out, c_in, K = w.shape
    return jnp.transpose(w, (0, 2, 1)).reshape(c_out, K * c_in)


# ------------------------------ fused kernel ---------------------------------

def _make_fused_tcn_kernel(layout, K, L, BL, mxu_dtype):
    x_row, C0 = layout["x"]
    blocks = layout["blocks"]
    head_row, c_last = layout["head"]
    c_max = max([C0] + [b["c_out"] for b in blocks])
    # all distinct causal shifts used anywhere in the network (static python ints)
    shifts = sorted({(K - 1 - k) * b["d"] for b in blocks for k in range(K - 1)})

    def kernel(slab_ref, o_ref):
        # ---- hoisted constants: one iota, one causal mask per distinct shift ----
        local_t = lax.broadcasted_iota(jnp.int32, (c_max, BL), 1) % L
        masks = {s: local_t >= s for s in shifts}
        ones_row = jnp.ones((1, BL), jnp.float32)

        def shifted(h, s, c):
            if s == 0:
                return h
            # XLU lane rotate; wraparound / cross-batch leakage removed by the causal mask.
            r = pltpu.roll(h, shift=s, axis=1)
            return jnp.where(masks[s][:c], r, 0.0)

        def conv(h, w_aug, d, c):
            # im2col: K causally shifted copies stacked on sublanes + ones row (bias).
            pieces = [shifted(h, (K - 1 - k) * d, c) for k in range(K)]
            pieces.append(ones_row)
            him = jnp.concatenate(pieces, axis=0)                 # (K*c + 1, BL)
            return jnp.dot(w_aug.astype(mxu_dtype), him.astype(mxu_dtype),
                           preferred_element_type=jnp.float32)

        h = slab_ref[x_row:x_row + C0, 0:BL]                      # (C0, BL) f32
        for b in blocks:
            c_in, c_out, d = b["c_in"], b["c_out"], b["d"]
            w1 = slab_ref[b["r1"]:b["r1"] + b["rows1"], 0:b["cols1"]]
            w2 = slab_ref[b["r2"]:b["r2"] + b["rows2"], 0:b["cols2"]]
            y1 = conv(h, w1, d, c_in)                             # (rows1, BL)
            if b["has_down"]:
                pre1, res = y1[:c_out], y1[c_out:]                # conv1 | fused downsample
            else:
                pre1, res = y1, h                                 # identity residual
            out1 = _leaky(pre1)
            out2 = _leaky(conv(out1, w2, d, c_out))
            h = _leaky(out2 + res)                                # stays in vregs/VMEM

        head = slab_ref[head_row:head_row + c_last, 0:2]
        wf = head[:, 0:1]                                         # (c_last, 1)
        bf = head[0:1, 1:2]                                       # (1, 1)
        # 1x1 head as VPU multiply + cross-sublane reduce (an M=1 MXU matmul would be <1% used).
        y = jnp.sum(h * wf, axis=0, keepdims=True) + bf
        o_ref[...] = jnp.tanh(y)                                  # (1, BL)

    return kernel


# --------------------------------- wrapper ------------------------------------

def model_forward(x, params, kernel_size, mxu_dtype=jnp.float32):
    """Equivalent of Model.forward: x (B, seq_len, hidden) -> (B, hidden). One pallas_call."""
    B, C0, L = x.shape
    K = kernel_size
    BL = B * L
    # layout plumbing (wrapper-side): channels on sublanes, batch*time on lanes.
    x2d = jnp.transpose(x, (1, 0, 2)).reshape(C0, BL).astype(jnp.float32)

    # ---- build per-block augmented weights (bias column; downsample fused into conv1) ----
    segs = [x2d]
    blocks_meta = []
    c_in = C0
    for i, (w1, b1, w2, b2, wd, bd) in enumerate(params["blocks"]):
        c_out = w1.shape[0]
        d = 2 ** i
        has_down = wd is not None
        w1aug = jnp.concatenate([_pack_conv_weight(w1), b1.reshape(c_out, 1)], axis=1)
        if has_down:
            # downsample rows use the shift-0 (k = K-1) column block + the bias column
            down = jnp.concatenate(
                [jnp.zeros((c_out, (K - 1) * c_in), jnp.float32), wd,
                 bd.reshape(c_out, 1)], axis=1)
            w1aug = jnp.concatenate([w1aug, down], axis=0)
        w2aug = jnp.concatenate([_pack_conv_weight(w2), b2.reshape(c_out, 1)], axis=1)
        segs += [w1aug, w2aug]
        blocks_meta.append(dict(c_in=c_in, c_out=c_out, d=d, has_down=has_down,
                                rows1=int(w1aug.shape[0]), cols1=int(w1aug.shape[1]),
                                rows2=int(w2aug.shape[0]), cols2=int(w2aug.shape[1])))
        c_in = c_out
    c_last = c_in
    head = jnp.zeros((c_last, 2), jnp.float32)
    head = head.at[:, 0].set(params["wf"].reshape(c_last))
    head = head.at[0, 1].set(params["bf"].reshape(()))
    segs.append(head)

    # ---- pack everything into ONE contiguous slab -> one entry DMA ----
    width = max(int(s.shape[1]) for s in segs)
    offs, rows = [], 0
    for s in segs:
        offs.append(rows)
        rows += _round_up(int(s.shape[0]), 8)        # 8-aligned row start per segment
    slab = jnp.zeros((rows, width), jnp.float32)
    for off, s in zip(offs, segs):
        slab = slab.at[off:off + s.shape[0], 0:s.shape[1]].set(s)

    layout = dict(x=(offs[0], C0), blocks=[], head=(offs[-1], c_last))
    flops = 2 * c_last * BL
    si = 1
    for bm in blocks_meta:
        bm = dict(bm, r1=offs[si], r2=offs[si + 1])
        si += 2
        layout["blocks"].append(bm)
        flops += 2 * BL * (bm["rows1"] * bm["cols1"] + bm["rows2"] * bm["cols2"])

    out = pl.pallas_call(
        _make_fused_tcn_kernel(layout, K, L, BL, mxu_dtype),
        out_shape=jax.ShapeDtypeStruct((1, BL), jnp.float32),
        in_specs=[pl.BlockSpec(memory_space=pltpu.MemorySpace.VMEM)],
        out_specs=pl.BlockSpec(memory_space=pltpu.MemorySpace.VMEM),
        cost_estimate=pl.CostEstimate(flops=flops, transcendentals=BL,
                                      bytes_accessed=int(rows * width) * 4 + BL * 4),
    )(slab)
    return out.reshape(B, L)


# ----------------------------- parameter init ---------------------------------

def init_params(key, seq_len, num_channels, kernel_size):
    blocks = []
    c_in = seq_len
    for c_out in num_channels:
        key, k1, k2, k3, k4, k5, k6 = jax.random.split(key, 7)
        w1 = 0.01 * jax.random.normal(k1, (c_out, c_in, kernel_size), jnp.float32)
        b1 = 0.01 * jax.random.normal(k2, (c_out,), jnp.float32)
        w2 = 0.01 * jax.random.normal(k3, (c_out, c_out, kernel_size), jnp.float32)
        b2 = 0.01 * jax.random.normal(k4, (c_out,), jnp.float32)
        if c_in != c_out:
            wd = 0.01 * jax.random.normal(k5, (c_out, c_in), jnp.float32)
            bd = 0.01 * jax.random.normal(k6, (c_out,), jnp.float32)
        else:
            wd, bd = None, None
        blocks.append((w1, b1, w2, b2, wd, bd))
        c_in = c_out
    key, k1, k2 = jax.random.split(key, 3)
    wf = 0.01 * jax.random.normal(k1, (1, num_channels[-1]), jnp.float32)
    bf = 0.01 * jax.random.normal(k2, (1, 1), jnp.float32)
    return {"blocks": blocks, "wf": wf, "bf": bf}


# ------------------------- pure-JAX reference (check) --------------------------

def _ref_causal_conv(x, w, b, d):
    K = w.shape[-1]
    pad = (K - 1) * d
    y = lax.conv_general_dilated(
        x, w, window_strides=(1,), padding=[(pad, pad)],
        rhs_dilation=(d,), dimension_numbers=("NCH", "OIH", "NCH"),
        precision=lax.Precision.HIGHEST)
    y = y[:, :, : x.shape[2]]                        # Chomp1d
    return y + b[None, :, None]


def ref_forward(x, params, kernel_size):
    h = x
    for i, (w1, b1, w2, b2, wd, bd) in enumerate(params["blocks"]):
        d = 2 ** i
        o1 = _leaky(_ref_causal_conv(h, w1, b1, d))
        o2 = _leaky(_ref_causal_conv(o1, w2, b2, d))
        if wd is None:
            res = h
        else:
            res = jnp.einsum("oc,bcl->bol", wd, h,
                             precision=lax.Precision.HIGHEST) + bd[None, :, None]
        h = _leaky(o2 + res)
    y = jnp.einsum("oc,bcl->bol", params["wf"], h,
                   precision=lax.Precision.HIGHEST) + params["bf"].reshape(1, 1, 1)
    return jnp.tanh(y)[:, 0]


# ------------------------------------ main -------------------------------------

if __name__ == "__main__":
    # hp.seq_len = 8 (conv channels), temporal length (hiddenDim) = 32,
    # hp.num_channels = [16, 16], hp.kernel_size = 3.
    # batch = 4 so that B*L = 128 fills every 128-lane vreg (lane-density feedback).
    B, seq_len, hidden = 4, 8, 32
    num_channels = [16, 16]
    kernel_size = 3

    key = jax.random.PRNGKey(0)
    kx, kp = jax.random.split(key)
    x = jax.random.normal(kx, (B, seq_len, hidden), jnp.float32)
    params = init_params(kp, seq_len, num_channels, kernel_size)

    ref = ref_forward(x, params, kernel_size)

    # f32-at-MXU path (default) — tight correctness check.
    fwd = jax.jit(lambda xx, pp: model_forward(xx, pp, kernel_size))
    out = jax.block_until_ready(fwd(x, params))
    assert out.shape == (B, hidden)
    np.testing.assert_allclose(np.asarray(out), np.asarray(ref), rtol=1e-3, atol=1e-5)

    # bf16-at-MXU path (v6e/v7x fast path; f32 accumulation, f32 VPU/EUP math).
    fwd_bf16 = jax.jit(lambda xx, pp: model_forward(xx, pp, kernel_size,
                                                    mxu_dtype=jnp.bfloat16))
    out_bf16 = jax.block_until_ready(fwd_bf16(x, params))
    np.testing.assert_allclose(np.asarray(out_bf16), np.asarray(ref), rtol=2e-2, atol=5e-4)

    print("KERNEL_OK")
</pallas_src>

<mosaic_0001>
module attributes {stable_mosaic.version = 11 : i64} {
  func.func @kernel(%arg0: memref<104x128xf32, #tpu.memory_space<vmem>>, %arg1: memref<1x128xf32, #tpu.memory_space<vmem>>) attributes {dimension_semantics = [], scalar_prefetch = 0 : i64, scratch_operands = 0 : i64, tpu.core_type = #tpu.core_type<tc>} {
    %0 = tpu.iota {dimensions = array<i32: 1>} : vector<16x128xi32>
    %c32_i32 = arith.constant 32 : i32
    %c0_i32 = arith.constant 0 : i32
    %1 = arith.cmpi eq, %c32_i32, %c0_i32 : i32
    %c1_i32 = arith.constant 1 : i32
    %2 = arith.select %1, %c1_i32, %c32_i32 : i32
    %3 = vector.broadcast %2 : i32 to vector<16x128xi32>
    %4 = arith.remsi %0, %3 : vector<16x128xi32>
    %c0_i32_0 = arith.constant 0 : i32
    %5 = vector.broadcast %c0_i32_0 : i32 to vector<16x128xi32>
    %6 = arith.cmpi ne, %4, %5 : vector<16x128xi32>
    %c0_i32_1 = arith.constant 0 : i32
    %7 = vector.broadcast %c0_i32_1 : i32 to vector<16x128xi32>
    %8 = arith.cmpi slt, %4, %7 : vector<16x128xi32>
    %c0_i32_2 = arith.constant 0 : i32
    %9 = arith.cmpi slt, %2, %c0_i32_2 : i32
    %10 = vector.broadcast %9 : i1 to vector<16x128xi1>
    %11 = vector.broadcast %10 : vector<16x128xi1> to vector<16x128xi1>
    %12 = arith.xori %8, %11 : vector<16x128xi1>
    %13 = arith.andi %12, %6 : vector<16x128xi1>
    %14 = vector.broadcast %2 : i32 to vector<16x128xi32>
    %15 = arith.addi %4, %14 : vector<16x128xi32>
    %16 = arith.select %13, %15, %4 : vector<16x128xi1>, vector<16x128xi32>
    %c1_i32_3 = arith.constant 1 : i32
    %17 = vector.broadcast %c1_i32_3 : i32 to vector<16x128xi32>
    %18 = arith.cmpi sge, %16, %17 : vector<16x128xi32>
    %c2_i32 = arith.constant 2 : i32
    %19 = vector.broadcast %c2_i32 : i32 to vector<16x128xi32>
    %20 = arith.cmpi sge, %16, %19 : vector<16x128xi32>
    %c4_i32 = arith.constant 4 : i32
    %21 = vector.broadcast %c4_i32 : i32 to vector<16x128xi32>
    %22 = arith.cmpi sge, %16, %21 : vector<16x128xi32>
    %cst = arith.constant 1.000000e+00 : f32
    %23 = vector.broadcast %cst : f32 to vector<1x128xf32>
    %c0 = arith.constant 0 : index
    %c0_4 = arith.constant 0 : index
    %24 = vector.load %arg0[%c0, %c0_4] : memref<104x128xf32, #tpu.memory_space<vmem>>, vector<8x128xf32>
    %c8 = arith.constant 8 : index
    %c0_5 = arith.constant 0 : index
    %25 = vector.load %arg0[%c8, %c0_5] : memref<104x128xf32, #tpu.memory_space<vmem>>, vector<32x25xf32>
    %c40 = arith.constant 40 : index
    %c0_6 = arith.constant 0 : index
    %26 = vector.load %arg0[%c40, %c0_6] : memref<104x128xf32, #tpu.memory_space<vmem>>, vector<16x49xf32>
    %c2_i32_7 = arith.constant 2 : i32
    %27 = tpu.dynamic_rotate %24 by %c2_i32_7 dim 1 : vector<8x128xf32>, i32 -> vector<8x128xf32>
    %28 = vector.extract_strided_slice %20 {offsets = [0, 0], sizes = [8, 128], strides = [1, 1]} : vector<16x128xi1> to vector<8x128xi1>
    %cst_8 = arith.constant 0.000000e+00 : f32
    %29 = vector.broadcast %cst_8 : f32 to vector<8x128xf32>
    %30 = arith.select %28, %27, %29 : vector<8x128xi1>, vector<8x128xf32>
    %c1_i32_9 = arith.constant 1 : i32
    %31 = tpu.dynamic_rotate %24 by %c1_i32_9 dim 1 : vector<8x128xf32>, i32 -> vector<8x128xf32>
    %32 = vector.extract_strided_slice %18 {offsets = [0, 0], sizes = [8, 128], strides = [1, 1]} : vector<16x128xi1> to vector<8x128xi1>
    %cst_10 = arith.constant 0.000000e+00 : f32
    %33 = vector.broadcast %cst_10 : f32 to vector<8x128xf32>
    %34 = arith.select %32, %31, %33 : vector<8x128xi1>, vector<8x128xf32>
    %35 = tpu.concatenate %30, %34, %24, %23 in 0 : vector<8x128xf32>, vector<8x128xf32>, vector<8x128xf32>, vector<1x128xf32> -> vector<25x128xf32>
    %cst_11 = arith.constant dense<0.000000e+00> : vector<32x128xf32>
    %36 = tpu.matmul %25, %35, %cst_11 {dimension_numbers = #tpu.dot_dimension_numbers<[1], [0], [0], [1], [0, 0, 1, 1], [], []>} : vector<32x25xf32>, vector<25x128xf32>, vector<32x128xf32> -> vector<32x128xf32>
    %37 = vector.extract_strided_slice %36 {offsets = [0, 0], sizes = [16, 128], strides = [1, 1]} : vector<32x128xf32> to vector<16x128xf32>
    %38 = vector.extract_strided_slice %36 {offsets = [16, 0], sizes = [16, 128], strides = [1, 1]} : vector<32x128xf32> to vector<16x128xf32>
    %cst_12 = arith.constant 0.000000e+00 : f32
    %39 = vector.broadcast %cst_12 : f32 to vector<16x128xf32>
    %40 = arith.cmpf ogt, %37, %39 : vector<16x128xf32>
    %cst_13 = arith.constant 0.00999999977 : f32
    %41 = vector.broadcast %cst_13 : f32 to vector<16x128xf32>
    %42 = arith.mulf %41, %37 : vector<16x128xf32>
    %43 = arith.select %40, %37, %42 : vector<16x128xi1>, vector<16x128xf32>
    %c2_i32_14 = arith.constant 2 : i32
    %44 = tpu.dynamic_rotate %43 by %c2_i32_14 dim 1 : vector<16x128xf32>, i32 -> vector<16x128xf32>
    %cst_15 = arith.constant 0.000000e+00 : f32
    %45 = vector.broadcast %cst_15 : f32 to vector<16x128xf32>
    %46 = arith.select %20, %44, %45 : vector<16x128xi1>, vector<16x128xf32>
    %c1_i32_16 = arith.constant 1 : i32
    %47 = tpu.dynamic_rotate %43 by %c1_i32_16 dim 1 : vector<16x128xf32>, i32 -> vector<16x128xf32>
    %cst_17 = arith.constant 0.000000e+00 : f32
    %48 = vector.broadcast %cst_17 : f32 to vector<16x128xf32>
    %49 = arith.select %18, %47, %48 : vector<16x128xi1>, vector<16x128xf32>
    %50 = tpu.concatenate %46, %49, %43, %23 in 0 : vector<16x128xf32>, vector<16x128xf32>, vector<16x128xf32>, vector<1x128xf32> -> vector<49x128xf32>
    %cst_18 = arith.constant dense<0.000000e+00> : vector<16x128xf32>
    %51 = tpu.matmul %26, %50, %cst_18 {dimension_numbers = #tpu.dot_dimension_numbers<[1], [0], [0], [1], [0, 0, 1, 1], [], []>} : vector<16x49xf32>, vector<49x128xf32>, vector<16x128xf32> -> vector<16x128xf32>
    %cst_19 = arith.constant 0.000000e+00 : f32
    %52 = vector.broadcast %cst_19 : f32 to vector<16x128xf32>
    %53 = arith.cmpf ogt, %51, %52 : vector<16x128xf32>
    %cst_20 = arith.constant 0.00999999977 : f32
    %54 = vector.broadcast %cst_20 : f32 to vector<16x128xf32>
    %55 = arith.mulf %54, %51 : vector<16x128xf32>
    %56 = arith.select %53, %51, %55 : vector<16x128xi1>, vector<16x128xf32>
    %57 = arith.addf %56, %38 : vector<16x128xf32>
    %cst_21 = arith.constant 0.000000e+00 : f32
    %58 = vector.broadcast %cst_21 : f32 to vector<16x128xf32>
    %59 = arith.cmpf ogt, %57, %58 : vector<16x128xf32>
    %cst_22 = arith.constant 0.00999999977 : f32
    %60 = vector.broadcast %cst_22 : f32 to vector<16x128xf32>
    %61 = arith.mulf %60, %57 : vector<16x128xf32>
    %62 = arith.select %59, %57, %61 : vector<16x128xi1>, vector<16x128xf32>
    %c56 = arith.constant 56 : index
    %c0_23 = arith.constant 0 : index
    %63 = vector.load %arg0[%c56, %c0_23] : memref<104x128xf32, #tpu.memory_space<vmem>>, vector<16x49xf32>
    %c72 = arith.constant 72 : index
    %c0_24 = arith.constant 0 : index
    %64 = vector.load %arg0[%c72, %c0_24] : memref<104x128xf32, #tpu.memory_space<vmem>>, vector<16x49xf32>
    %c4_i32_25 = arith.constant 4 : i32
    %65 = tpu.dynamic_rotate %62 by %c4_i32_25 dim 1 : vector<16x128xf32>, i32 -> vector<16x128xf32>
    %cst_26 = arith.constant 0.000000e+00 : f32
    %66 = vector.broadcast %cst_26 : f32 to vector<16x128xf32>
    %67 = arith.select %22, %65, %66 : vector<16x128xi1>, vector<16x128xf32>
    %c2_i32_27 = arith.constant 2 : i32
    %68 = tpu.dynamic_rotate %62 by %c2_i32_27 dim 1 : vector<16x128xf32>, i32 -> vector<16x128xf32>
    %cst_28 = arith.constant 0.000000e+00 : f32
    %69 = vector.broadcast %cst_28 : f32 to vector<16x128xf32>
    %70 = arith.select %20, %68, %69 : vector<16x128xi1>, vector<16x128xf32>
    %71 = tpu.concatenate %67, %70, %62, %23 in 0 : vector<16x128xf32>, vector<16x128xf32>, vector<16x128xf32>, vector<1x128xf32> -> vector<49x128xf32>
    %cst_29 = arith.constant dense<0.000000e+00> : vector<16x128xf32>
    %72 = tpu.matmul %63, %71, %cst_29 {dimension_numbers = #tpu.dot_dimension_numbers<[1], [0], [0], [1], [0, 0, 1, 1], [], []>} : vector<16x49xf32>, vector<49x128xf32>, vector<16x128xf32> -> vector<16x128xf32>
    %cst_30 = arith.constant 0.000000e+00 : f32
    %73 = vector.broadcast %cst_30 : f32 to vector<16x128xf32>
    %74 = arith.cmpf ogt, %72, %73 : vector<16x128xf32>
    %cst_31 = arith.constant 0.00999999977 : f32
    %75 = vector.broadcast %cst_31 : f32 to vector<16x128xf32>
    %76 = arith.mulf %75, %72 : vector<16x128xf32>
    %77 = arith.select %74, %72, %76 : vector<16x128xi1>, vector<16x128xf32>
    %c4_i32_32 = arith.constant 4 : i32
    %78 = tpu.dynamic_rotate %77 by %c4_i32_32 dim 1 : vector<16x128xf32>, i32 -> vector<16x128xf32>
    %cst_33 = arith.constant 0.000000e+00 : f32
    %79 = vector.broadcast %cst_33 : f32 to vector<16x128xf32>
    %80 = arith.select %22, %78, %79 : vector<16x128xi1>, vector<16x128xf32>
    %c2_i32_34 = arith.constant 2 : i32
    %81 = tpu.dynamic_rotate %77 by %c2_i32_34 dim 1 : vector<16x128xf32>, i32 -> vector<16x128xf32>
    %cst_35 = arith.constant 0.000000e+00 : f32
    %82 = vector.broadcast %cst_35 : f32 to vector<16x128xf32>
    %83 = arith.select %20, %81, %82 : vector<16x128xi1>, vector<16x128xf32>
    %84 = tpu.concatenate %80, %83, %77, %23 in 0 : vector<16x128xf32>, vector<16x128xf32>, vector<16x128xf32>, vector<1x128xf32> -> vector<49x128xf32>
    %cst_36 = arith.constant dense<0.000000e+00> : vector<16x128xf32>
    %85 = tpu.matmul %64, %84, %cst_36 {dimension_numbers = #tpu.dot_dimension_numbers<[1], [0], [0], [1], [0, 0, 1, 1], [], []>} : vector<16x49xf32>, vector<49x128xf32>, vector<16x128xf32> -> vector<16x128xf32>
    %cst_37 = arith.constant 0.000000e+00 : f32
    %86 = vector.broadcast %cst_37 : f32 to vector<16x128xf32>
    %87 = arith.cmpf ogt, %85, %86 : vector<16x128xf32>
    %cst_38 = arith.constant 0.00999999977 : f32
    %88 = vector.broadcast %cst_38 : f32 to vector<16x128xf32>
    %89 = arith.mulf %88, %85 : vector<16x128xf32>
    %90 = arith.select %87, %85, %89 : vector<16x128xi1>, vector<16x128xf32>
    %91 = arith.addf %90, %62 : vector<16x128xf32>
    %cst_39 = arith.constant 0.000000e+00 : f32
    %92 = vector.broadcast %cst_39 : f32 to vector<16x128xf32>
    %93 = arith.cmpf ogt, %91, %92 : vector<16x128xf32>
    %cst_40 = arith.constant 0.00999999977 : f32
    %94 = vector.broadcast %cst_40 : f32 to vector<16x128xf32>
    %95 = arith.mulf %94, %91 : vector<16x128xf32>
    %96 = arith.select %93, %91, %95 : vector<16x128xi1>, vector<16x128xf32>
    %c88 = arith.constant 88 : index
    %c0_41 = arith.constant 0 : index
    %97 = vector.load %arg0[%c88, %c0_41] : memref<104x128xf32, #tpu.memory_space<vmem>>, vector<16x2xf32>
    %98 = vector.extract_strided_slice %97 {offsets = [0, 0], sizes = [16, 1], strides = [1, 1]} : vector<16x2xf32> to vector<16x1xf32>
    %99 = vector.extract_strided_slice %97 {offsets = [0, 1], sizes = [1, 1], strides = [1, 1]} : vector<16x2xf32> to vector<1x1xf32>
    %100 = vector.broadcast %98 : vector<16x1xf32> to vector<16x128xf32>
    %101 = arith.mulf %96, %100 : vector<16x128xf32>
    %cst_42 = arith.constant dense<0.000000e+00> : vector<128xf32>
    %102 = vector.multi_reduction <add>, %101, %cst_42 [0] : vector<16x128xf32> to vector<128xf32>
    %103 = vector.shape_cast %102 : vector<128xf32> to vector<1x128xf32>
    %104 = vector.broadcast %99 : vector<1x1xf32> to vector<1x128xf32>
    %105 = arith.addf %103, %104 : vector<1x128xf32>
    %106 = math.tanh %105 : vector<1x128xf32>
    %c0_43 = arith.constant 0 : index
    %c0_44 = arith.constant 0 : index
    %107 = vector.load %arg1[%c0_43, %c0_44] : memref<1x128xf32, #tpu.memory_space<vmem>>, vector<1x128xf32>
    tpu.vector_store %arg1[%c0_43, %c0_44], %106 {strides = array<i32>} : memref<1x128xf32, #tpu.memory_space<vmem>>, vector<1x128xf32>,
    return
  }
}

</mosaic_0001>

<llo_original>
// kernel: _lambda_.1
$region0: #{_lambda_.1}
  #allocation0 [shape = 'u32[]', space=smem, size = 0x4, offset = 0x4, fixed_abs, tag = 'smem constant byte address 0x4 - core index']
  #allocation1 [shape = 'u32[144,128]{1,0:T(1,128)}', space=vmem, size = 0x12000, scoped, tag = 'internal scratch']
  %s0 = inlined_call_operand.vmem [shape: f32[104,128], index: 0, kind: input, shape index: {}]
  %s1 = inlined_call_operand.vmem [shape: f32[1,128], index: 1, kind: output, shape index: {}]
  %s2 = sld [smem:[#allocation0]]
  $region14: #{_lambda_.1} parent=0
    _
  %s4 = ssub.s32 1, %s2
  %s5 = scalar_select 0, %s4, %s2
  // Predicated region
  $region2: #{_lambda_.1} parent=0 // pred_check
    _
  $region3: #{_lambda_.1} parent=0 // pred_check_branch
    %7 = sbr.rel (0) target = $region5
  $region4: #{_lambda_.1} parent=0 // pred_region
    _
  $region5: #{_lambda_.1} parent=0 // pred_fallthru
    _
  %v8 = vlaneseq
  %v9 = vand.u32 %v8, 127
  %vm10 = vcmp.lt.s32.totalorder %v9, 0
  %v11 = vsub.s32 0, %v9
  %v12 = vsel %vm10, %v11, %v9
  %v13 = vshrl.u32 %v12, 5
  %v14 = vand.u32 %v12, 31
  %v15 = vsub.s32 0, %v14
  %v16 = vsel %vm10, %v15, %v14
  %vm17 = vcmp.ne.s32.totalorder %v16, 0
  %vm18 = vcmp.lt.s32.totalorder %v16, 0
  %vm19 = vmand %vm18, %vm17
  %v20 = vadd.s32 %v16, 32
  %v21 = vsel %vm19, %v20, %v16
  %vm22 = vcmp.ge.s32.totalorder %v21, 1
  %vm23 = vcmp.ge.s32.totalorder %v21, 2
  %vm24 = vcmp.ge.s32.totalorder %v21, 4
  %v25 = vld [vmem:[%s0] sm:$0xff]
  %v26 = vld [vmem:[%s0 + $0x8] sm:$0xff]
  %v27 = vld [vmem:[%s0 + $0x10] sm:$0xff]
  %v28 = vld [vmem:[%s0 + $0x18] sm:$0xff]
  %v29 = vld [vmem:[%s0 + $0x20] sm:$0xff]
  %v30 = vld [vmem:[%s0 + $0x28] sm:$0xff]
  %v31 = vld [vmem:[%s0 + $0x30] sm:$0xff]
  %32 = vrot.lane.b32.xlu0 %v25, 2
  %v33 = vpop.permute.xlu0 %32
  %v34 = vsel %vm23, %v33, 0.0
  %35 = vrot.lane.b32.xlu0 %v25, 1
  %v36 = vpop.permute.xlu0 %35
  %v37 = vsel %vm22, %v36, 0.0
  %vm38 = vcmask 203776
  %v40 = vsel %vm38, %v26, 0
  %v43 = vsel %vm38, %v27, 0
  %v46 = vsel %vm38, %v28, 0
  %v49 = vsel %vm38, %v29, 0
  %vm51 = vcmask 1040384
  %v53 = vsel %vm51, 1.0, 0
  %55 = vmatprep.subr.mxu0 0.0
  %56 = vmatpush1.msra.mxu0 0.0
  %57 = vmatprep.subr.mxu0 0.0
  %58 = vmatpush1.msra.mxu0 0.0
  %59 = vmatprep.subr.mxu0 0.0
  %60 = vmatpush1.msra.mxu0 0.0
  %61 = vmatprep.subr.mxu0 0.0
  %62 = vmatpush1.msra.mxu0 0.0
  %63 = vmatprep.subr.mxu0 0.0
  %64 = vmatpush1.msra.mxu0 0.0
  %65 = vmatprep.subr.mxu0 0.0
  %66 = vmatpush1.msra.mxu0 0.0
  %67 = vmatprep.subr.mxu0 0.0
  %68 = vmatpush1.msra.mxu0 0.0
  %69 = vmatprep.subr.mxu0 0.0
  %70 = vmatpush1.msra.mxu0 0.0
  %71 = vmatprep.subr.mxu0 0.0
  %72 = vmatpush1.msra.mxu0 0.0
  %73 = vmatprep.subr.mxu0 0.0
  %74 = vmatpush1.msra.mxu0 0.0
  %75 = vmatprep.subr.mxu0 0.0
  %76 = vmatpush1.msra.mxu0 0.0
  %77 = vmatprep.subr.mxu0 0.0
  %78 = vmatpush1.msra.mxu0 0.0
  %79 = vmatprep.subr.mxu0 0.0
  %80 = vmatpush1.msra.mxu0 %v53
  %81 = vmatprep.subr.mxu0 0.0
  %82 = vmatpush1.msra.mxu0 %v25
  %83 = vmatprep.subr.mxu0 0.0
  %84 = vmatpush1.msra.mxu0 %v37
  %85 = vmatprep.subr.mxu0 0.0
  %86 = vmatpush1.msra.mxu0 %v34
  %87 = vmatprep.subr.mxu0 0.0
  %88 = vmatpush2.msra.mxu0 0.0
  %89 = vmatprep.subr.mxu0 0.0
  %90 = vmatpush2.msra.mxu0 0.0
  %91 = vmatprep.subr.mxu0 0.0
  %92 = vmatpush2.msra.mxu0 0.0
  %93 = vmatprep.subr.mxu0 0.0
  %94 = vmatpush2.msra.mxu0 0.0
  %95 = vmatprep.subr.mxu0 0.0
  %96 = vmatpush2.msra.mxu0 0.0
  %97 = vmatprep.subr.mxu0 0.0
  %98 = vmatpush2.msra.mxu0 0.0
  %99 = vmatprep.subr.mxu0 0.0
  %100 = vmatpush2.msra.mxu0 0.0
  %101 = vmatprep.subr.mxu0 0.0
  %102 = vmatpush2.msra.mxu0 0.0
  %103 = vmatprep.subr.mxu0 0.0
  %104 = vmatpush2.msra.mxu0 0.0
  %105 = vmatprep.subr.mxu0 0.0
  %106 = vmatpush2.msra.mxu0 0.0
  %107 = vmatprep.subr.mxu0 0.0
  %108 = vmatpush2.msra.mxu0 0.0
  %109 = vmatprep.subr.mxu0 0.0
  %110 = vmatpush2.msra.mxu0 0.0
  %111 = vmatprep.subr.mxu0 0.0
  %112 = vmatpush2.msra.mxu0 0.0
  %113 = vmatprep.subr.mxu0 0.0
  %114 = vmatpush2.msra.mxu0 0.0
  %115 = vmatprep.subr.mxu0 0.0
  %116 = vmatpush2.msra.mxu0 0.0
  %117 = vmatprep.subr.mxu0 0.0
  %118 = vmatpush2.msra.mxu0 0.0
  %119 = vmatprep.mubr.f32.mxu0 0.0
  %120 = vmatmul.mubr.f32.gmra.mxu0 %v40
  %v121 = vpop.f32.mrf.mxu0
  %v122 = vadd.f32 0.0, %v121
  %v123 = vpop.f32.mrf.mxu0
  %124 = vmatprep.mubr.f32.mxu0 0.0
  %125 = vmatmul.mubr.f32.gmra.mxu0 %v43
  %v126 = vpop.f32.mrf.mxu0
  %v127 = vadd.f32 0.0, %v126
  %v128 = vpop.f32.mrf.mxu0
  %129 = vmatprep.mubr.f32.mxu0 0.0
  %130 = vmatmul.mubr.f32.gmra.mxu0 %v46
  %v131 = vpop.f32.mrf.mxu0
  %v132 = vadd.f32 0.0, %v131
  %v133 = vpop.f32.mrf.mxu0
  %134 = vmatprep.mubr.f32.mxu0 0.0
  %135 = vmatmul.mubr.f32.gmra.mxu0 %v49
  %v136 = vpop.f32.mrf.mxu0
  %v137 = vadd.f32 0.0, %v136
  %v138 = vpop.f32.mrf.mxu0
  %139 = vdwg.mxu0
  %vm140 = vcmp.gt.f32.partialorder %v122, 0.0
  %vm141 = vcmp.gt.f32.partialorder %v127, 0.0
  %v142 = vmul.f32 %v122, 0.01
  %v143 = vmul.f32 %v127, 0.01
  %v144 = vsel %vm140, %v122, %v142
  %v145 = vsel %vm141, %v127, %v143
  %146 = vrot.lane.b32.xlu0 %v144, 2
  %v147 = vpop.permute.xlu0 %146
  %148 = vrot.lane.b32.xlu0 %v145, 2
  %v149 = vpop.permute.xlu0 %148
  %v150 = vsel %vm23, %v147, 0.0
  %v151 = vsel %vm23, %v149, 0.0
  %152 = vrot.lane.b32.xlu0 %v144, 1
  %v153 = vpop.permute.xlu0 %152
  %154 = vrot.lane.b32.xlu0 %v145, 1
  %v155 = vpop.permute.xlu0 %154
  %v156 = vsel %vm22, %v153, 0.0
  %v157 = vsel %vm22, %v155, 0.0
  %vm158 = vcmask 400384
  %v160 = vsel %vm158, %v30, 0
  %v163 = vsel %vm158, %v31, 0
  %165 = vmatprep.subr.mxu0 0.0
  %166 = vmatpush1.msra.mxu0 0.0
  %167 = vmatprep.subr.mxu0 0.0
  %168 = vmatpush1.msra.mxu0 0.0
  %169 = vmatprep.subr.mxu0 0.0
  %170 = vmatpush1.msra.mxu0 0.0
  %171 = vmatprep.subr.mxu0 0.0
  %172 = vmatpush1.msra.mxu0 0.0
  %173 = vmatprep.subr.mxu0 0.0
  %174 = vmatpush1.msra.mxu0 0.0
  %175 = vmatprep.subr.mxu0 0.0
  %176 = vmatpush1.msra.mxu0 0.0
  %177 = vmatprep.subr.mxu0 0.0
  %178 = vmatpush1.msra.mxu0 0.0
  %179 = vmatprep.subr.mxu0 0.0
  %180 = vmatpush1.msra.mxu0 0.0
  %181 = vmatprep.subr.mxu0 0.0
  %182 = vmatpush1.msra.mxu0 0.0
  %183 = vmatprep.subr.mxu0 0.0
  %184 = vmatpush1.msra.mxu0 %v53
  %185 = vmatprep.subr.mxu0 0.0
  %186 = vmatpush1.msra.mxu0 %v145
  %187 = vmatprep.subr.mxu0 0.0
  %188 = vmatpush1.msra.mxu0 %v144
  %189 = vmatprep.subr.mxu0 0.0
  %190 = vmatpush1.msra.mxu0 %v157
  %191 = vmatprep.subr.mxu0 0.0
  %192 = vmatpush1.msra.mxu0 %v156
  %193 = vmatprep.subr.mxu0 0.0
  %194 = vmatpush1.msra.mxu0 %v151
  %195 = vmatprep.subr.mxu0 0.0
  %196 = vmatpush1.msra.mxu0 %v150
  %197 = vmatprep.subr.mxu0 0.0
  %198 = vmatpush2.msra.mxu0 0.0
  %199 = vmatprep.subr.mxu0 0.0
  %200 = vmatpush2.msra.mxu0 0.0
  %201 = vmatprep.subr.mxu0 0.0
  %202 = vmatpush2.msra.mxu0 0.0
  %203 = vmatprep.subr.mxu0 0.0
  %204 = vmatpush2.msra.mxu0 0.0
  %205 = vmatprep.subr.mxu0 0.0
  %206 = vmatpush2.msra.mxu0 0.0
  %207 = vmatprep.subr.mxu0 0.0
  %208 = vmatpush2.msra.mxu0 0.0
  %209 = vmatprep.subr.mxu0 0.0
  %210 = vmatpush2.msra.mxu0 0.0
  %211 = vmatprep.subr.mxu0 0.0
  %212 = vmatpush2.msra.mxu0 0.0
  %213 = vmatprep.subr.mxu0 0.0
  %214 = vmatpush2.msra.mxu0 0.0
  %215 = vmatprep.subr.mxu0 0.0
  %216 = vmatpush2.msra.mxu0 0.0
  %217 = vmatprep.subr.mxu0 0.0
  %218 = vmatpush2.msra.mxu0 0.0
  %219 = vmatprep.subr.mxu0 0.0
  %220 = vmatpush2.msra.mxu0 0.0
  %221 = vmatprep.subr.mxu0 0.0
  %222 = vmatpush2.msra.mxu0 0.0
  %223 = vmatprep.subr.mxu0 0.0
  %224 = vmatpush2.msra.mxu0 0.0
  %225 = vmatprep.subr.mxu0 0.0
  %226 = vmatpush2.msra.mxu0 0.0
  %227 = vmatprep.subr.mxu0 0.0
  %228 = vmatpush2.msra.mxu0 0.0
  %229 = vmatprep.mubr.f32.mxu0 0.0
  %230 = vmatmul.mubr.f32.gmra.mxu0 %v160
  %v231 = vpop.f32.mrf.mxu0
  %v232 = vadd.f32 0.0, %v231
  %v233 = vpop.f32.mrf.mxu0
  %234 = vmatprep.mubr.f32.mxu0 0.0
  %235 = vmatmul.mubr.f32.gmra.mxu0 %v163
  %v236 = vpop.f32.mrf.mxu0
  %v237 = vadd.f32 0.0, %v236
  %v238 = vpop.f32.mrf.mxu0
  %239 = vdwg.mxu0
  %vm240 = vcmp.gt.f32.partialorder %v232, 0.0
  %vm241 = vcmp.gt.f32.partialorder %v237, 0.0
  %v242 = vmul.f32 %v232, 0.01
  %v243 = vmul.f32 %v237, 0.01
  %v244 = vsel %vm240, %v232, %v242
  %v245 = vsel %vm241, %v237, %v243
  %v246 = vadd.f32 %v244, %v132
  %v247 = vadd.f32 %v245, %v137
  %vm248 = vcmp.gt.f32.partialorder %v246, 0.0
  %vm249 = vcmp.gt.f32.partialorder %v247, 0.0
  %v250 = vmul.f32 %v246, 0.01
  %v251 = vmul.f32 %v247, 0.01
  %v252 = vsel %vm248, %v246, %v250
  %v253 = vsel %vm249, %v247, %v251
  %v254 = vld [vmem:[%s0 + $0x38] sm:$0xff]
  %v255 = vld [vmem:[%s0 + $0x40] sm:$0xff]
  %v256 = vld [vmem:[%s0 + $0x48] sm:$0xff]
  %v257 = vld [vmem:[%s0 + $0x50] sm:$0xff]
  %258 = vrot.lane.b32.xlu0 %v252, 4
  %v259 = vpop.permute.xlu0 %258
  %260 = vrot.lane.b32.xlu0 %v253, 4
  %v261 = vpop.permute.xlu0 %260
  %v262 = vsel %vm24, %v259, 0.0
  %v263 = vsel %vm24, %v261, 0.0
  %264 = vrot.lane.b32.xlu0 %v252, 2
  %v265 = vpop.permute.xlu0 %264
  %266 = vrot.lane.b32.xlu0 %v253, 2
  %v267 = vpop.permute.xlu0 %266
  %v268 = vsel %vm23, %v265, 0.0
  %v269 = vsel %vm23, %v267, 0.0
  %v271 = vsel %vm158, %v254, 0
  %v274 = vsel %vm158, %v255, 0
  %276 = vmatprep.subr.mxu0 0.0
  %277 = vmatpush1.msra.mxu0 0.0
  %278 = vmatprep.subr.mxu0 0.0
  %279 = vmatpush1.msra.mxu0 0.0
  %280 = vmatprep.subr.mxu0 0.0
  %281 = vmatpush1.msra.mxu0 0.0
  %282 = vmatprep.subr.mxu0 0.0
  %283 = vmatpush1.msra.mxu0 0.0
  %284 = vmatprep.subr.mxu0 0.0
  %285 = vmatpush1.msra.mxu0 0.0
  %286 = vmatprep.subr.mxu0 0.0
  %287 = vmatpush1.msra.mxu0 0.0
  %288 = vmatprep.subr.mxu0 0.0
  %289 = vmatpush1.msra.mxu0 0.0
  %290 = vmatprep.subr.mxu0 0.0
  %291 = vmatpush1.msra.mxu0 0.0
  %292 = vmatprep.subr.mxu0 0.0
  %293 = vmatpush1.msra.mxu0 0.0
  %294 = vmatprep.subr.mxu0 0.0
  %295 = vmatpush1.msra.mxu0 %v53
  %296 = vmatprep.subr.mxu0 0.0
  %297 = vmatpush1.msra.mxu0 %v253
  %298 = vmatprep.subr.mxu0 0.0
  %299 = vmatpush1.msra.mxu0 %v252
  %300 = vmatprep.subr.mxu0 0.0
  %301 = vmatpush1.msra.mxu0 %v269
  %302 = vmatprep.subr.mxu0 0.0
  %303 = vmatpush1.msra.mxu0 %v268
  %304 = vmatprep.subr.mxu0 0.0
  %305 = vmatpush1.msra.mxu0 %v263
  %306 = vmatprep.subr.mxu0 0.0
  %307 = vmatpush1.msra.mxu0 %v262
  %308 = vmatprep.subr.mxu0 0.0
  %309 = vmatpush2.msra.mxu0 0.0
  %310 = vmatprep.subr.mxu0 0.0
  %311 = vmatpush2.msra.mxu0 0.0
  %312 = vmatprep.subr.mxu0 0.0
  %313 = vmatpush2.msra.mxu0 0.0
  %314 = vmatprep.subr.mxu0 0.0
  %315 = vmatpush2.msra.mxu0 0.0
  %316 = vmatprep.subr.mxu0 0.0
  %317 = vmatpush2.msra.mxu0 0.0
  %318 = vmatprep.subr.mxu0 0.0
  %319 = vmatpush2.msra.mxu0 0.0
  %320 = vmatprep.subr.mxu0 0.0
  %321 = vmatpush2.msra.mxu0 0.0
  %322 = vmatprep.subr.mxu0 0.0
  %323 = vmatpush2.msra.mxu0 0.0
  %324 = vmatprep.subr.mxu0 0.0
  %325 = vmatpush2.msra.mxu0 0.0
  %326 = vmatprep.subr.mxu0 0.0
  %327 = vmatpush2.msra.mxu0 0.0
  %328 = vmatprep.subr.mxu0 0.0
  %329 = vmatpush2.msra.mxu0 0.0
  %330 = vmatprep.subr.mxu0 0.0
  %331 = vmatpush2.msra.mxu0 0.0
  %332 = vmatprep.subr.mxu0 0.0
  %333 = vmatpush2.msra.mxu0 0.0
  %334 = vmatprep.subr.mxu0 0.0
  %335 = vmatpush2.msra.mxu0 0.0
  %336 = vmatprep.subr.mxu0 0.0
  %337 = vmatpush2.msra.mxu0 0.0
  %338 = vmatprep.subr.mxu0 0.0
  %339 = vmatpush2.msra.mxu0 0.0
  %340 = vmatprep.mubr.f32.mxu0 0.0
  %341 = vmatmul.mubr.f32.gmra.mxu0 %v271
  %v342 = vpop.f32.mrf.mxu0
  %v343 = vadd.f32 0.0, %v342
  %v344 = vpop.f32.mrf.mxu0
  %345 = vmatprep.mubr.f32.mxu0 0.0
  %346 = vmatmul.mubr.f32.gmra.mxu0 %v274
  %v347 = vpop.f32.mrf.mxu0
  %v348 = vadd.f32 0.0, %v347
  %v349 = vpop.f32.mrf.mxu0
  %350 = vdwg.mxu0
  %vm351 = vcmp.gt.f32.partialorder %v343, 0.0
  %vm352 = vcmp.gt.f32.partialorder %v348, 0.0
  %v353 = vmul.f32 %v343, 0.01
  %v354 = vmul.f32 %v348, 0.01
  %v355 = vsel %vm351, %v343, %v353
  %v356 = vsel %vm352, %v348, %v354
  %357 = vrot.lane.b32.xlu0 %v355, 4
  %v358 = vpop.permute.xlu0 %357
  %359 = vrot.lane.b32.xlu0 %v356, 4
  %v360 = vpop.permute.xlu0 %359
  %v361 = vsel %vm24, %v358, 0.0
  %v362 = vsel %vm24, %v360, 0.0
  %363 = vrot.lane.b32.xlu0 %v355, 2
  %v364 = vpop.permute.xlu0 %363
  %365 = vrot.lane.b32.xlu0 %v356, 2
  %v366 = vpop.permute.xlu0 %365
  %v367 = vsel %vm23, %v364, 0.0
  %v368 = vsel %vm23, %v366, 0.0
  %v370 = vsel %vm158, %v256, 0
  %v373 = vsel %vm158, %v257, 0
  %375 = vmatprep.subr.mxu0 0.0
  %376 = vmatpush1.msra.mxu0 0.0
  %377 = vmatprep.subr.mxu0 0.0
  %378 = vmatpush1.msra.mxu0 0.0
  %379 = vmatprep.subr.mxu0 0.0
  %380 = vmatpush1.msra.mxu0 0.0
  %381 = vmatprep.subr.mxu0 0.0
  %382 = vmatpush1.msra.mxu0 0.0
  %383 = vmatprep.subr.mxu0 0.0
  %384 = vmatpush1.msra.mxu0 0.0
  %385 = vmatprep.subr.mxu0 0.0
  %386 = vmatpush1.msra.mxu0 0.0
  %387 = vmatprep.subr.mxu0 0.0
  %388 = vmatpush1.msra.mxu0 0.0
  %389 = vmatprep.subr.mxu0 0.0
  %390 = vmatpush1.msra.mxu0 0.0
  %391 = vmatprep.subr.mxu0 0.0
  %392 = vmatpush1.msra.mxu0 0.0
  %393 = vmatprep.subr.mxu0 0.0
  %394 = vmatpush1.msra.mxu0 %v53
  %395 = vmatprep.subr.mxu0 0.0
  %396 = vmatpush1.msra.mxu0 %v356
  %397 = vmatprep.subr.mxu0 0.0
  %398 = vmatpush1.msra.mxu0 %v355
  %399 = vmatprep.subr.mxu0 0.0
  %400 = vmatpush1.msra.mxu0 %v368
  %401 = vmatprep.subr.mxu0 0.0
  %402 = vmatpush1.msra.mxu0 %v367
  %403 = vmatprep.subr.mxu0 0.0
  %404 = vmatpush1.msra.mxu0 %v362
  %405 = vmatprep.subr.mxu0 0.0
  %406 = vmatpush1.msra.mxu0 %v361
  %407 = vmatprep.subr.mxu0 0.0
  %408 = vmatpush2.msra.mxu0 0.0
  %409 = vmatprep.subr.mxu0 0.0
  %410 = vmatpush2.msra.mxu0 0.0
  %411 = vmatprep.subr.mxu0 0.0
  %412 = vmatpush2.msra.mxu0 0.0
  %413 = vmatprep.subr.mxu0 0.0
  %414 = vmatpush2.msra.mxu0 0.0
  %415 = vmatprep.subr.mxu0 0.0
  %416 = vmatpush2.msra.mxu0 0.0
  %417 = vmatprep.subr.mxu0 0.0
  %418 = vmatpush2.msra.mxu0 0.0
  %419 = vmatprep.subr.mxu0 0.0
  %420 = vmatpush2.msra.mxu0 0.0
  %421 = vmatprep.subr.mxu0 0.0
  %422 = vmatpush2.msra.mxu0 0.0
  %423 = vmatprep.subr.mxu0 0.0
  %424 = vmatpush2.msra.mxu0 0.0
  %425 = vmatprep.subr.mxu0 0.0
  %426 = vmatpush2.msra.mxu0 0.0
  %427 = vmatprep.subr.mxu0 0.0
  %428 = vmatpush2.msra.mxu0 0.0
  %429 = vmatprep.subr.mxu0 0.0
  %430 = vmatpush2.msra.mxu0 0.0
  %431 = vmatprep.subr.mxu0 0.0
  %432 = vmatpush2.msra.mxu0 0.0
  %433 = vmatprep.subr.mxu0 0.0
  %434 = vmatpush2.msra.mxu0 0.0
  %435 = vmatprep.subr.mxu0 0.0
  %436 = vmatpush2.msra.mxu0 0.0
  %437 = vmatprep.subr.mxu0 0.0
  %438 = vmatpush2.msra.mxu0 0.0
  %439 = vmatprep.mubr.f32.mxu0 0.0
  %440 = vmatmul.mubr.f32.gmra.mxu0 %v370
  %v441 = vpop.f32.mrf.mxu0
  %v442 = vadd.f32 0.0, %v441
  %v443 = vpop.f32.mrf.mxu0
  %444 = vmatprep.mubr.f32.mxu0 0.0
  %445 = vmatmul.mubr.f32.gmra.mxu0 %v373
  %v446 = vpop.f32.mrf.mxu0
  %v447 = vadd.f32 0.0, %v446
  %v448 = vpop.f32.mrf.mxu0
  %449 = vdwg.mxu0
  %vm450 = vcmp.gt.f32.partialorder %v442, 0.0
  %vm451 = vcmp.gt.f32.partialorder %v447, 0.0
  %v452 = vmul.f32 %v442, 0.01
  %v453 = vmul.f32 %v447, 0.01
  %v454 = vsel %vm450, %v442, %v452
  %v455 = vsel %vm451, %v447, %v453
  %v456 = vadd.f32 %v454, %v252
  %v457 = vadd.f32 %v455, %v253
  %vm458 = vcmp.gt.f32.partialorder %v456, 0.0
  %vm459 = vcmp.gt.f32.partialorder %v457, 0.0
  %v460 = vmul.f32 %v456, 0.01
  %v461 = vmul.f32 %v457, 0.01
  %v462 = vsel %vm458, %v456, %v460
  %v463 = vsel %vm459, %v457, %v461
  %v464 = vld [vmem:[%s0 + $0x58] sm:$0xff]
  %v465 = vld [vmem:[%s0 + $0x60] sm:$0xff]
  %467 = vset.pattern.permute.xlu0 0
  %468 = vperm.xlu0 %467, %v464
  %v469 = vpop.permute.xlu0 %468
  %472 = vset.pattern.permute.xlu0 0
  %473 = vperm.xlu0 %472, %v465
  %v474 = vpop.permute.xlu0 %473
  %v476 = vmul.f32 %v462, %v469
  %v477 = vmul.f32 %v463, %v474
  %v478 = vadd.f32 %v476, %v477
  %v479 = vrot.slane %v478, 4
  %v480 = vadd.f32 %v478, %v479
  %v481 = vrot.slane %v480, 2
  %v482 = vadd.f32 %v480, %v481
  %v483 = vrot.slane %v482, 1
  %v484 = vadd.f32 %v482, %v483
  %485 = vset.pattern.permute.xlu0 1
  %486 = vperm.xlu0 %485, %v464
  %v487 = vpop.permute.xlu0 %486
  %v489 = vadd.f32 %v484, %v487
  %v490 = vtanh.pop %v489
  %491 = vst [vmem:[%s1] sm:$0x1] %v490
  // Predicated region
  $region6: #{_lambda_.1} parent=0 // pred_check
    _
  $region7: #{_lambda_.1} parent=0 // pred_check_branch
    %493 = sbr.rel (0) target = $region9
  $region8: #{_lambda_.1} parent=0 // pred_region
    _
  $region9: #{_lambda_.1} parent=0 // pred_fallthru
    _
  // Predicated region
  $region10: #{_lambda_.1} parent=0 // pred_check
    _
  $region11: #{_lambda_.1} parent=0 // pred_check_branch
    %495 = sbr.rel (0) target = $region13
  $region12: #{_lambda_.1} parent=0 // pred_region
    _
  $region13: #{_lambda_.1} parent=0 // pred_fallthru
    _

</llo_original>
